<compile_context>
chip_gen: v7x
topology: tpu7x:2x2x1
jax: 0.10.0
libtpu: 0.0.40
codegen_flags: <defaults>
</compile_context>

<pallas_src>
import functools
import math

import jax
import jax.numpy as jnp
from jax.experimental import pallas as pl
from jax.experimental.pallas import tpu as pltpu

EPS = 1e-12                                   # LayerNorm variance_epsilon
_VMEM_BUDGET_BYTES = 10 * 1024 * 1024         # conservative live-VMEM budget (fits v5e/v7x scoped defaults)
_VMEM_TABLE_LIMIT_BYTES = 4 * 1024 * 1024     # vocab table <= this -> keep resident in VMEM
_GATHER_CHUNK = 16                            # rows per DMA wave in the HBM-gather path


def _layernorm_affine(x, gamma, beta, out_dtype):
    """x: (rows, H) f32. Matches torch LayerNorm: u=mean, s=mean((x-u)^2), affine."""
    inv_h = jnp.float32(1.0 / x.shape[-1])
    u = jnp.sum(x, axis=-1, keepdims=True) * inv_h
    xc = x - u
    var = jnp.sum(xc * xc, axis=-1, keepdims=True) * inv_h
    rstd = jax.lax.rsqrt(var + jnp.float32(EPS))          # EUP rsqrt instead of sqrt + div
    return (xc * (gamma * rstd) + beta).astype(out_dtype)  # fused affine


# --------------------------------------------------------------------------------------
# Fast path: whole vocab table resident in VMEM, gather = in-VMEM dynamic row indexing.
# --------------------------------------------------------------------------------------
def _emb_vmem_kernel(ids_ref, w_ref, p_ref, g_ref, b_ref, o_ref, wbuf):
    s_idx = pl.program_id(0)
    b_idx = pl.program_id(1)
    ts = wbuf.shape[0]
    base = s_idx * ts

    @pl.loop(0, ts)
    def _gather(i):
        row = ids_ref[b_idx, base + i]
        wbuf[pl.ds(i, 1), :] = w_ref[pl.ds(row, 1), :]

    x = wbuf[...].astype(jnp.float32) + p_ref[...].astype(jnp.float32)
    g = g_ref[...].astype(jnp.float32)
    b = b_ref[...].astype(jnp.float32)
    o_ref[...] = _layernorm_affine(x, g, b, o_ref.dtype)


# --------------------------------------------------------------------------------------
# Large-vocab path: table in HBM, chunked double-buffered row-gather DMAs overlapped
# with per-chunk LayerNorm compute.
# --------------------------------------------------------------------------------------
def _emb_hbm_kernel(ids_ref, w_hbm, p_ref, g_ref, b_ref, o_ref, wbuf, sems, *, chunk):
    s_idx = pl.program_id(0)
    b_idx = pl.program_id(1)
    ts = o_ref.shape[0]
    n_chunks = ts // chunk
    base = s_idx * ts

    def issue(c, slot):
        # Unrolled row-gather DMA starts.  All ids SMEM reads happen before any .wait()
        # (keeps sst->sld forwarding), and at most 2*chunk copies are ever in flight.
        for i in range(chunk):
            row = ids_ref[b_idx, base + c * chunk + i]
            pltpu.make_async_copy(
                w_hbm.at[pl.ds(row, 1), :],
                wbuf.at[slot, pl.ds(i, 1), :],
                sems.at[slot],
            ).start()

    def wait(slot):
        # Single-semaphore wait for the whole chunk: descriptor has the same dtype and
        # total byte count as the `chunk` row copies signalled on sems[slot].
        pltpu.make_async_copy(
            w_hbm.at[pl.ds(0, chunk), :],
            wbuf.at[slot],
            sems.at[slot],
        ).wait()

    g = g_ref[...].astype(jnp.float32)   # hoisted out of the chunk loop
    b = b_ref[...].astype(jnp.float32)

    issue(0, 0)                           # prologue

    @pl.loop(0, n_chunks)
    def _body(c):
        slot = c & 1

        @pl.when(c + 1 < n_chunks)
        def _prefetch_next():
            issue(c + 1, 1 - slot)

        wait(slot)
        start = pl.multiple_of(c * chunk, chunk)
        x = wbuf[slot].astype(jnp.float32) + p_ref[pl.ds(start, chunk), :].astype(jnp.float32)
        o_ref[pl.ds(start, chunk), :] = _layernorm_affine(x, g, b, o_ref.dtype)


# --------------------------------------------------------------------------------------
# Tile selection (VMEM-budget aware) and wrapper.
# --------------------------------------------------------------------------------------
def _pick_token_tile(S, H, pos_itemsize, table_itemsize, use_vmem_table, table_bytes):
    out_itemsize = 4
    per_token = H * (2 * pos_itemsize + 2 * out_itemsize)   # double-buffered pos in + out
    fixed = 0
    if use_vmem_table:
        per_token += H * table_itemsize                     # (ts, H) gather scratch
        fixed += 2 * table_bytes                            # resident table (double-buffered)
    else:
        fixed += 2 * _GATHER_CHUNK * H * table_itemsize     # (2, chunk, H) gather scratch
    avail = max(_VMEM_BUDGET_BYTES - fixed, per_token * 8)
    max_ts = max(8, avail // per_token)
    for cand in (2048, 1024, 512, 256, 128, 64, 32, 16, 8):
        if cand <= max_ts and S % cand == 0:
            return cand
    return S  # short / ragged sequences: one whole-sequence slab per step


def embeddings_forward(input_ids, word_emb, pos_emb, gamma, beta, *,
                       token_tile=None, force_hbm_gather=False):
    B, S = input_ids.shape
    V, H = word_emb.shape
    assert pos_emb.shape[0] >= S, "sequence longer than max_position_size"

    ids = input_ids.astype(jnp.int32)
    # NOTE: ids are scalar-prefetched into SMEM (padded to [ceil(B/8)*8, ceil(S/128)*128]
    # int32 words) — fine for typical B*S, guard if you push this to very long sequences.
    w = word_emb                                   # stored dtype; bf16 tables halve gather bytes
    p = jax.lax.slice(pos_emb, (0, 0), (S, H))     # only the first S rows are ever used
    g2 = gamma.reshape(1, H)
    b2 = beta.reshape(1, H)
    out_dtype = w.dtype

    table_bytes = V * H * w.dtype.itemsize
    use_vmem_table = (not force_hbm_gather) and table_bytes <= _VMEM_TABLE_LIMIT_BYTES

    ts = token_tile if token_tile is not None else _pick_token_tile(
        S, H, p.dtype.itemsize, w.dtype.itemsize, use_vmem_table, table_bytes)
    assert S % ts == 0, "token_tile must divide the sequence length"

    grid = (S // ts, B)   # batch innermost -> pos tile reused across batch elements

    common_in_specs = [
        pl.BlockSpec((ts, H), lambda s, b, ids: (s, 0)),   # positional rows
        pl.BlockSpec((1, H), lambda s, b, ids: (0, 0)),    # gamma
        pl.BlockSpec((1, H), lambda s, b, ids: (0, 0)),    # beta
    ]
    out_spec = pl.BlockSpec((None, ts, H), lambda s, b, ids: (b, s, 0))

    if use_vmem_table:
        kernel = _emb_vmem_kernel
        in_specs = [pl.BlockSpec((V, H), lambda s, b, ids: (0, 0))] + common_in_specs
        scratch = [pltpu.VMEM((ts, H), w.dtype)]
    else:
        chunk = math.gcd(ts, _GATHER_CHUNK)
        assert V >= chunk, "vocab smaller than gather chunk"
        kernel = functools.partial(_emb_hbm_kernel, chunk=chunk)
        in_specs = [pl.BlockSpec(memory_space=pl.ANY)] + common_in_specs
        scratch = [pltpu.VMEM((2, chunk, H), w.dtype),
                   pltpu.SemaphoreType.DMA((2,))]

    grid_spec = pltpu.PrefetchScalarGridSpec(
        num_scalar_prefetch=1,          # input_ids -> SMEM, drive the gather / index maps
        grid=grid,
        in_specs=in_specs,
        out_specs=out_spec,
        scratch_shapes=scratch,
    )

    return pl.pallas_call(
        kernel,
        out_shape=jax.ShapeDtypeStruct((B, S, H), out_dtype),
        grid_spec=grid_spec,
        compiler_params=pltpu.CompilerParams(
            dimension_semantics=("arbitrary", "parallel")),
    )(ids, w, p, g2, b2)


def embeddings_reference(input_ids, word_emb, pos_emb, gamma, beta):
    S = input_ids.shape[1]
    w = word_emb[input_ids].astype(jnp.float32)
    p = pos_emb[jnp.arange(S)][None, :, :].astype(jnp.float32)
    x = w + p
    u = x.mean(-1, keepdims=True)
    s = ((x - u) ** 2).mean(-1, keepdims=True)
    xn = (x - u) / jnp.sqrt(s + EPS)
    return gamma.astype(jnp.float32) * xn + beta.astype(jnp.float32)


if __name__ == "__main__":
    key = jax.random.PRNGKey(0)
    k_w, k_p, k_ids, k_w2, k_p2, k_ids2 = jax.random.split(key, 6)

    # ---- Config A: small vocab -> VMEM-resident table fast path ----
    V, H, P, B, S = 32, 128, 16, 2, 16
    word_emb = jax.random.normal(k_w, (V, H), dtype=jnp.float32)
    pos_emb = jax.random.normal(k_p, (P, H), dtype=jnp.float32)
    gamma = jnp.ones((H,), dtype=jnp.float32)
    beta = jnp.zeros((H,), dtype=jnp.float32)
    input_ids = jax.random.randint(k_ids, (B, S), 0, V, dtype=jnp.int32)

    out = jax.block_until_ready(
        embeddings_forward(input_ids, word_emb, pos_emb, gamma, beta))
    ref = embeddings_reference(input_ids, word_emb, pos_emb, gamma, beta)
    assert out.shape == (B, S, H)
    assert jnp.allclose(out, ref, atol=1e-5, rtol=1e-5), "fast-path mismatch vs reference"

    # ---- Config B: force the HBM manual-gather (chunked double-buffered DMA) path ----
    V2, H2, P2, B2, S2 = 64, 256, 32, 2, 32
    word_emb2 = jax.random.normal(k_w2, (V2, H2), dtype=jnp.float32)
    pos_emb2 = jax.random.normal(k_p2, (P2, H2), dtype=jnp.float32)
    gamma2 = jnp.ones((H2,), dtype=jnp.float32)
    beta2 = jnp.zeros((H2,), dtype=jnp.float32)
    input_ids2 = jax.random.randint(k_ids2, (B2, S2), 0, V2, dtype=jnp.int32)

    out2 = jax.block_until_ready(
        embeddings_forward(input_ids2, word_emb2, pos_emb2, gamma2, beta2,
                           force_hbm_gather=True))
    ref2 = embeddings_reference(input_ids2, word_emb2, pos_emb2, gamma2, beta2)
    assert out2.shape == (B2, S2, H2)
    assert jnp.allclose(out2, ref2, atol=1e-5, rtol=1e-5), "HBM-path mismatch vs reference"

    print("KERNEL_OK")
</pallas_src>

<mosaic_0001>
module attributes {stable_mosaic.version = 11 : i64} {
  func.func @_emb_vmem_kernel(%arg0: i32, %arg1: i32, %arg2: memref<2x16xi32, #tpu.memory_space<smem>>, %arg3: memref<32x128xf32, #tpu.memory_space<vmem>>, %arg4: memref<16x128xf32, #tpu.memory_space<vmem>>, %arg5: memref<1x128xf32, #tpu.memory_space<vmem>>, %arg6: memref<1x128xf32, #tpu.memory_space<vmem>>, %arg7: memref<1x16x128xf32, #tpu.memory_space<vmem>>, %arg8: memref<16x128xf32, #tpu.memory_space<vmem>>) attributes {dimension_semantics = [#tpu.dimension_semantics<arbitrary>, #tpu.dimension_semantics<parallel>], iteration_bounds = array<i64: 1, 2>, scalar_prefetch = 1 : i64, scratch_operands = 1 : i64, tpu.core_type = #tpu.core_type<tc>, window_params = [{pipeline_mode = #tpu.pipeline_mode<synchronous>, transform_indices = @transform_0, window_bounds = array<i64: 32, 128>}, {transform_indices = @transform_1, window_bounds = array<i64: 16, 128>}, {pipeline_mode = #tpu.pipeline_mode<synchronous>, transform_indices = @transform_2, window_bounds = array<i64: 1, 128>}, {pipeline_mode = #tpu.pipeline_mode<synchronous>, transform_indices = @transform_3, window_bounds = array<i64: 1, 128>}, {transform_indices = @transform_4, window_bounds = array<i64: 1, 16, 128>}]} {
    %c16_i32 = arith.constant 16 : i32
    %0 = arith.muli %arg0, %c16_i32 : i32
    %c0_i32 = arith.constant 0 : i32
    %c16_i32_0 = arith.constant 16 : i32
    %1 = arith.addi %c0_i32, %c16_i32_0 : i32
    %c1_i32 = arith.constant 1 : i32
    scf.for %arg9 = %c0_i32 to %1 step %c1_i32  : i32 {
      %c1_i32_16 = arith.constant 1 : i32
      %30 = arith.muli %arg9, %c1_i32_16 : i32
      %c0_i32_17 = arith.constant 0 : i32
      %31 = arith.addi %c0_i32_17, %30 : i32
      %32 = arith.addi %0, %31 : i32
      %33 = arith.index_cast %arg1 : i32 to index
      %34 = arith.index_cast %32 : i32 to index
      %35 = memref.load %arg2[%33, %34] : memref<2x16xi32, #tpu.memory_space<smem>>
      %36 = arith.index_cast %35 : i32 to index
      %c0_18 = arith.constant 0 : index
      %37 = vector.load %arg3[%36, %c0_18] : memref<32x128xf32, #tpu.memory_space<vmem>>, vector<1x128xf32>
      %38 = arith.index_cast %31 : i32 to index
      %c0_19 = arith.constant 0 : index
      %39 = vector.load %arg8[%38, %c0_19] : memref<16x128xf32, #tpu.memory_space<vmem>>, vector<1x128xf32>
      tpu.vector_store %arg8[%38, %c0_19], %37 {strides = array<i32>} : memref<16x128xf32, #tpu.memory_space<vmem>>, vector<1x128xf32>,
    }
    %c16_i32_1 = arith.constant 16 : i32
    %c0 = arith.constant 0 : index
    %c0_2 = arith.constant 0 : index
    %2 = vector.load %arg8[%c0, %c0_2] : memref<16x128xf32, #tpu.memory_space<vmem>>, vector<16x128xf32>
    %c0_3 = arith.constant 0 : index
    %c0_4 = arith.constant 0 : index
    %3 = vector.load %arg4[%c0_3, %c0_4] : memref<16x128xf32, #tpu.memory_space<vmem>>, vector<16x128xf32>
    %4 = arith.addf %2, %3 : vector<16x128xf32>
    %c0_5 = arith.constant 0 : index
    %c0_6 = arith.constant 0 : index
    %5 = vector.load %arg5[%c0_5, %c0_6] : memref<1x128xf32, #tpu.memory_space<vmem>>, vector<1x128xf32>
    %c0_7 = arith.constant 0 : index
    %c0_8 = arith.constant 0 : index
    %6 = vector.load %arg6[%c0_7, %c0_8] : memref<1x128xf32, #tpu.memory_space<vmem>>, vector<1x128xf32>
    %cst = arith.constant dense<0.000000e+00> : vector<16xf32>
    %7 = vector.multi_reduction <add>, %4, %cst [1] : vector<16x128xf32> to vector<16xf32>
    %8 = vector.shape_cast %7 : vector<16xf32> to vector<16x1xf32>
    %cst_9 = arith.constant 7.812500e-03 : f32
    %9 = vector.broadcast %cst_9 : f32 to vector<16x1xf32>
    %10 = arith.mulf %8, %9 : vector<16x1xf32>
    %11 = vector.broadcast %10 : vector<16x1xf32> to vector<16x128xf32>
    %12 = arith.subf %4, %11 : vector<16x128xf32>
    %13 = arith.mulf %12, %12 : vector<16x128xf32>
    %cst_10 = arith.constant dense<0.000000e+00> : vector<16xf32>
    %14 = vector.multi_reduction <add>, %13, %cst_10 [1] : vector<16x128xf32> to vector<16xf32>
    %15 = vector.shape_cast %14 : vector<16xf32> to vector<16x1xf32>
    %cst_11 = arith.constant 7.812500e-03 : f32
    %16 = vector.broadcast %cst_11 : f32 to vector<16x1xf32>
    %17 = arith.mulf %15, %16 : vector<16x1xf32>
    %cst_12 = arith.constant 9.99999996E-13 : f32
    %18 = vector.broadcast %cst_12 : f32 to vector<16x1xf32>
    %19 = arith.addf %17, %18 : vector<16x1xf32>
    %20 = math.rsqrt %19 : vector<16x1xf32>
    %21 = vector.broadcast %5 : vector<1x128xf32> to vector<16x128xf32>
    %22 = vector.broadcast %20 : vector<16x1xf32> to vector<16x128xf32>
    %23 = arith.mulf %21, %22 : vector<16x128xf32>
    %24 = arith.mulf %12, %23 : vector<16x128xf32>
    %25 = vector.broadcast %6 : vector<1x128xf32> to vector<16x128xf32>
    %26 = arith.addf %24, %25 : vector<16x128xf32>
    %c0_13 = arith.constant 0 : index
    %c0_14 = arith.constant 0 : index
    %c0_15 = arith.constant 0 : index
    %27 = vector.load %arg7[%c0_13, %c0_14, %c0_15] : memref<1x16x128xf32, #tpu.memory_space<vmem>>, vector<1x16x128xf32>
    %28 = vector.shape_cast %27 : vector<1x16x128xf32> to vector<16x128xf32>
    %29 = vector.shape_cast %26 : vector<16x128xf32> to vector<1x16x128xf32>
    tpu.vector_store %arg7[%c0_13, %c0_14, %c0_15], %29 {strides = array<i32>} : memref<1x16x128xf32, #tpu.memory_space<vmem>>, vector<1x16x128xf32>,
    return
  }
  func.func @transform_0(%arg0: i32, %arg1: i32, %arg2: memref<2x16xi32, #tpu.memory_space<smem>>) -> (i32, i32) {
    %c0_i32 = arith.constant 0 : i32
    %c0_i32_0 = arith.constant 0 : i32
    %c0_i32_1 = arith.constant 0 : i32
    return %c0_i32, %c0_i32_0 : i32, i32
  }
  func.func @transform_1(%arg0: i32, %arg1: i32, %arg2: memref<2x16xi32, #tpu.memory_space<smem>>) -> (i32, i32) {
    %c0_i32 = arith.constant 0 : i32
    %c0_i32_0 = arith.constant 0 : i32
    return %arg0, %c0_i32 : i32, i32
  }
  func.func @transform_2(%arg0: i32, %arg1: i32, %arg2: memref<2x16xi32, #tpu.memory_space<smem>>) -> (i32, i32) {
    %c0_i32 = arith.constant 0 : i32
    %c0_i32_0 = arith.constant 0 : i32
    %c0_i32_1 = arith.constant 0 : i32
    return %c0_i32, %c0_i32_0 : i32, i32
  }
  func.func @transform_3(%arg0: i32, %arg1: i32, %arg2: memref<2x16xi32, #tpu.memory_space<smem>>) -> (i32, i32) {
    %c0_i32 = arith.constant 0 : i32
    %c0_i32_0 = arith.constant 0 : i32
    %c0_i32_1 = arith.constant 0 : i32
    return %c0_i32, %c0_i32_0 : i32, i32
  }
  func.func @transform_4(%arg0: i32, %arg1: i32, %arg2: memref<2x16xi32, #tpu.memory_space<smem>>) -> (i32, i32, i32) {
    %c0_i32 = arith.constant 0 : i32
    %c0_i32_0 = arith.constant 0 : i32
    return %arg1, %arg0, %c0_i32 : i32, i32, i32
  }
}

</mosaic_0001>

<llo_original>
// kernel: tpu_custom_call.1
$region0: #{tpu_custom_call.1}
  #allocation0 [shape = 'u32[]', space=smem, size = 0x4, offset = 0x4, fixed_abs, tag = 'smem constant byte address 0x4 - core index']
  #allocation1 [shape = 'u32[144,128]{1,0:T(1,128)}', space=vmem, size = 0x12000, scoped, tag = 'internal scratch']
  #allocation2 [shape = 'f32[16,128]{1,0:T(8,128)}', space=vmem, size = 0x2000, scoped, tag = 'scratch operand']
  #allocation3 [shape = 's32[1]{0}', space=sflag, size = 0x4, scoped, tag = 'scoped memory for tpu_custom_call.1']
  #allocation4 [shape = 'u8[1024]{0}', space=smem, size = 0x400, scoped, tag = 'prefetched SMEM operand 0']
  %s0 = inlined_call_operand.hbm [shape: s32[2,16], index: 0, kind: input, shape index: {}]
  %s1 = inlined_call_operand.hbm [shape: f32[32,128], index: 1, kind: input, shape index: {}]
  %s2 = inlined_call_operand.hbm [shape: f32[16,128], index: 2, kind: input, shape index: {}]
  %s3 = inlined_call_operand.vmem [shape: f32[1,128], index: 3, kind: input, shape index: {}]
  %s4 = inlined_call_operand.vmem [shape: f32[1,128], index: 4, kind: input, shape index: {}]
  %s5 = inlined_call_operand.hbm [shape: f32[2,16,128], index: 5, kind: output, shape index: {}]
  %s6 = sld [smem:[#allocation0]]
  $region64: #{tpu_custom_call.1} parent=0
    _
  %s8 = ssub.s32 1, %s6
  %s9 = scalar_select 0, %s8, %s6
  %11 = dma.hbm_to_smem %s0, 32, [#allocation4], [#allocation3]
  %12 = dma.done [#allocation3], 32
  %13 = sfence
  $region1: #{tpu_custom_call.1} parent=0
    #allocation5 [shape = 'u8[16384]{0}', space=vmem, size = 0x4000, scoped, tag = 'input window, operand 1, single buffered']
    #allocation6 [shape = 's32[2]{0}', space=sflag, size = 0x8, scoped, tag = 'scoped memory for tpu_custom_call.1']
    #allocation7 [shape = 's32[2]{0}', space=sflag, size = 0x8, scoped, tag = 'scoped memory for tpu_custom_call.1']
    #allocation8 [shape = 'u8[8192]{0}', space=vmem, size = 0x2000, scoped, tag = 'input window, operand 2, single buffered']
    #allocation9 [shape = 's32[1]{0}', space=sflag, size = 0x4, scoped, tag = 'scoped memory for tpu_custom_call.1']
    #allocation10 [shape = 'u8[16384]{0}', space=vmem, size = 0x4000, scoped, tag = 'output window, operand 0']
    %14 = vsyncpa [#allocation6], 0
    %15 = vsyncpa [#allocation9], 0
    %16 = vsyncpa [#allocation7], 0
    %s17 = scalar_lea.sflag [#allocation7], 1
    %18 = vsyncpa %s17, 0
    loop: start=0, step=1, limit=4
    $region2: #{tpu_custom_call.1} parent=1 // loop_pre_header
      _
    $region3: #{tpu_custom_call.1} parent=1 // loop_header
      %s20 = sphi 0, %s24
      %p21 = scmp.ge.s32.totalorder %s20, 4
      %s27 = sphi 0, %s39
      %s28 = sphi 0, %s35
      %s29 = sphi 0, %s27
      %s30 = sphi 0, %s28
      %s31 = sphi 0, %s29
      %s32 = sphi 0, %s30
      %s40 = sphi 0, %s40
      %s42 = sphi 0, %s40
      %s43 = sphi 0, %s42
      %s57 = sphi 0, %s43
      %s63 = sphi 0, %s65
      %s66 = sphi 0, %s63
      %s67 = sphi 0, %s66
      %s83 = sphi 0, %s67
      %s87 = sphi 0, %s87
      %s89 = sphi 0, %s87
      %s90 = sphi 0, %s89
      %s104 = sphi 0, %s90
      %s108 = sphi 0, %s108
      %s110 = sphi 0, %s108
      %s111 = sphi 0, %s110
      %s125 = sphi 0, %s111
      %s133 = sphi 0, %s135
      %s136 = sphi 0, %s133
      %s137 = sphi 0, %s136
      %s153 = sphi 0, %s137
    $region4: #{tpu_custom_call.1} parent=1 // loop_header_branch
      %23 = sbr.rel (%p21) target = $region8
    $region5: #{tpu_custom_call.1} parent=1 // loop_body
      %s25 = ssub.s32 %s20, 1
      %s26 = ssub.s32 %s20, 2
      %s33 = sadd.s32 1, %s28
      %p34 = scmp.ge.s32.totalorder %s33, 2
      %s35 = scalar_select %p34, 0, %s33
      %s36 = sadd.s32 1, %s27
      %s37 = scalar_select %p34, %s36, %s27
      %p38 = scmp.ge.s32.totalorder %s37, 1
      %s39 = scalar_select %p38, 0, %s37
      %s41 = sadd.s32 %s40, 1
      %p44 = scmp.eq.s32.totalorder %s20, 1
      %p45 = scmp.ne.s32.totalorder %s40, %s42
      %p46 = scmp.eq.s32.totalorder %s20, 0
      %p47 = por %p45, %p46
      %p48 = scmp.ne.s32.totalorder %s40, %s42
      %p49 = scmp.eq.s32.totalorder %s25, 1
      %p50 = por %p48, %p49
      %p51 = scmp.ne.s32.totalorder %s42, %s43
      %p52 = scmp.eq.s32.totalorder %s25, 0
      %p53 = por %p51, %p52
      %p54 = scmp.ne.s32.totalorder %s42, %s43
      %p55 = scmp.eq.s32.totalorder %s26, 1
      %p56 = por %p54, %p55
      %p58 = scmp.ne.s32.totalorder %s43, %s57
      %p59 = scmp.eq.s32.totalorder %s26, 0
      %p60 = por %p58, %p59
      %s61 = ssub.s32 %s27, %s39
      %p62 = scmp.eq.s32.totalorder %s61, 0
      %s64 = sadd.s32 %s63, 1
      %s65 = scalar_select %p62, %s63, %s64
      %p68 = pneg %p62
      %p69 = scmp.eq.s32.totalorder %s20, 1
      %p70 = por %p68, %p69
      %p71 = scmp.ne.s32.totalorder %s63, %s66
      %p72 = scmp.eq.s32.totalorder %s20, 0
      %p73 = por %p71, %p72
      %p74 = scmp.ne.s32.totalorder %s63, %s66
      %p75 = scmp.eq.s32.totalorder %s25, 1
      %p76 = por %p74, %p75
      %p77 = scmp.ne.s32.totalorder %s66, %s67
      %p78 = scmp.eq.s32.totalorder %s25, 0
      %p79 = por %p77, %p78
      %p80 = scmp.ne.s32.totalorder %s66, %s67
      %p81 = scmp.eq.s32.totalorder %s26, 1
      %p82 = por %p80, %p81
      %p84 = scmp.ne.s32.totalorder %s67, %s83
      %p85 = scmp.eq.s32.totalorder %s26, 0
      %p86 = por %p84, %p85
      %s88 = sadd.s32 %s87, 1
      %p91 = scmp.eq.s32.totalorder %s20, 1
      %p92 = scmp.ne.s32.totalorder %s87, %s89
      %p93 = scmp.eq.s32.totalorder %s20, 0
      %p94 = por %p92, %p93
      %p95 = scmp.ne.s32.totalorder %s87, %s89
      %p96 = scmp.eq.s32.totalorder %s25, 1
      %p97 = por %p95, %p96
      %p98 = scmp.ne.s32.totalorder %s89, %s90
      %p99 = scmp.eq.s32.totalorder %s25, 0
      %p100 = por %p98, %p99
      %p101 = scmp.ne.s32.totalorder %s89, %s90
      %p102 = scmp.eq.s32.totalorder %s26, 1
      %p103 = por %p101, %p102
      %p105 = scmp.ne.s32.totalorder %s90, %s104
      %p106 = scmp.eq.s32.totalorder %s26, 0
      %p107 = por %p105, %p106
      %s109 = sadd.s32 %s108, 1
      %p112 = scmp.eq.s32.totalorder %s20, 1
      %p113 = scmp.ne.s32.totalorder %s108, %s110
      %p114 = scmp.eq.s32.totalorder %s20, 0
      %p115 = por %p113, %p114
      %p116 = scmp.ne.s32.totalorder %s108, %s110
      %p117 = scmp.eq.s32.totalorder %s25, 1
      %p118 = por %p116, %p117
      %p119 = scmp.ne.s32.totalorder %s110, %s111
      %p120 = scmp.eq.s32.totalorder %s25, 0
      %p121 = por %p119, %p120
      %p122 = scmp.ne.s32.totalorder %s110, %s111
      %p123 = scmp.eq.s32.totalorder %s26, 1
      %p124 = por %p122, %p123
      %p126 = scmp.ne.s32.totalorder %s111, %s125
      %p127 = scmp.eq.s32.totalorder %s26, 0
      %p128 = por %p126, %p127
      %s129 = ssub.s32 %s28, %s35
      %s130 = ssub.s32 %s27, %s39
      %s131 = sor.u32 %s129, %s130
      %p132 = scmp.eq.s32.totalorder %s131, 0
      %s134 = sadd.s32 %s133, 1
      %s135 = scalar_select %p132, %s133, %s134
      %p138 = pneg %p132
      %p139 = scmp.eq.s32.totalorder %s20, 1
      %p140 = por %p138, %p139
      %p141 = scmp.ne.s32.totalorder %s133, %s136
      %p142 = scmp.eq.s32.totalorder %s20, 0
      %p143 = por %p141, %p142
      %p144 = scmp.ne.s32.totalorder %s133, %s136
      %p145 = scmp.eq.s32.totalorder %s25, 1
      %p146 = por %p144, %p145
      %p147 = scmp.ne.s32.totalorder %s136, %s137
      %p148 = scmp.eq.s32.totalorder %s25, 0
      %p149 = por %p147, %p148
      %p150 = scmp.ne.s32.totalorder %s136, %s137
      %p151 = scmp.eq.s32.totalorder %s26, 1
      %p152 = por %p150, %p151
      %p154 = scmp.ne.s32.totalorder %s137, %s153
      %p155 = scmp.eq.s32.totalorder %s26, 0
      %p156 = por %p154, %p155
      %p157 = scmp.le.s32.totalorder 1, %s20
      %p158 = scmp.lt.s32.totalorder %s20, 3
      %p159 = pnand %p157, %p158
      %p160 = pneg %p159
      // Predicated region
      $region9: #{tpu_custom_call.1} parent=5 // pred_check
        _
      $region10: #{tpu_custom_call.1} parent=5 // pred_check_branch
        %162 = sbr.rel (%p159) target = $region12
      $region11: #{tpu_custom_call.1} parent=5 // pred_region
        %s163 = ssub.s32 %s20, 1
        // Predicated region
        $region13: #{tpu_custom_call.1} parent=11 // pred_check
          %p164 = pneg %p53
        $region14: #{tpu_custom_call.1} parent=11 // pred_check_branch
          %166 = sbr.rel (%p164) target = $region16
        $region15: #{tpu_custom_call.1} parent=11 // pred_region
          %s168 = ssub.s32 512, 512
          %169 = vsyncadd [#allocation6], %s168
          %s170 = sshll.u32 [#allocation5], 4
          %s171 = int_to_ptr.vmem [resolvable:$true] %s170
          %176 = dma.hbm_to_vmem [thread:$0]  %s1, 512, %s171, [#allocation6], 128, 128, 8
        $region16: #{tpu_custom_call.1} parent=11 // pred_fallthru
          _
        // Predicated region
        $region17: #{tpu_custom_call.1} parent=11 // pred_check
          %p177 = pneg %p79
        $region18: #{tpu_custom_call.1} parent=11 // pred_check_branch
          %179 = sbr.rel (%p177) target = $region20
        $region19: #{tpu_custom_call.1} parent=11 // pred_region
          %s180 = smul.u32 2, %s29
          %s182 = ssub.s32 256, 256
          %183 = vsyncadd [#allocation9], %s182
          %s184 = smul.addr %s180, 128
          %s185 = scalar_lea.hbm %s2, %s184
          %s186 = sshll.u32 [#allocation8], 4
          %s187 = int_to_ptr.vmem [resolvable:$true] %s186
          %192 = dma.hbm_to_vmem [thread:$0]  %s185, 256, %s187, [#allocation9], 128, 128, 8
        $region20: #{tpu_custom_call.1} parent=11 // pred_fallthru
          _
        // Predicated region
        $region21: #{tpu_custom_call.1} parent=11 // pred_check
          %p193 = pneg %p100
        $region22: #{tpu_custom_call.1} parent=11 // pred_check_branch
          %195 = sbr.rel (%p193) target = $region24
        $region23: #{tpu_custom_call.1} parent=11 // pred_region
          _
        $region24: #{tpu_custom_call.1} parent=11 // pred_fallthru
          _
        // Predicated region
        $region25: #{tpu_custom_call.1} parent=11 // pred_check
          %p196 = pneg %p121
        $region26: #{tpu_custom_call.1} parent=11 // pred_check_branch
          %198 = sbr.rel (%p196) target = $region28
        $region27: #{tpu_custom_call.1} parent=11 // pred_region
          _
        $region28: #{tpu_custom_call.1} parent=11 // pred_fallthru
          _
      $region12: #{tpu_custom_call.1} parent=5 // pred_fallthru
        _
      %p199 = scmp.lt.s32.totalorder %s20, 2
      // Predicated region
      $region29: #{tpu_custom_call.1} parent=5 // pred_check
        %p200 = pneg %p199
      $region30: #{tpu_custom_call.1} parent=5 // pred_check_branch
        %202 = sbr.rel (%p200) target = $region32
      $region31: #{tpu_custom_call.1} parent=5 // pred_region
        _
      $region32: #{tpu_custom_call.1} parent=5 // pred_fallthru
        _
      %p203 = scmp.le.s32.totalorder 1, %s20
      %p204 = scmp.lt.s32.totalorder %s20, 3
      %p205 = pnand %p203, %p204
      %p206 = pneg %p205
      // Predicated region
      $region33: #{tpu_custom_call.1} parent=5 // pred_check
        _
      $region34: #{tpu_custom_call.1} parent=5 // pred_check_branch
        %208 = sbr.rel (%p205) target = $region36
      $region35: #{tpu_custom_call.1} parent=5 // pred_region
        %s209 = ssub.s32 %s20, 1
        // Predicated region
        $region37: #{tpu_custom_call.1} parent=35 // pred_check
          %p210 = pneg %p53
        $region38: #{tpu_custom_call.1} parent=35 // pred_check_branch
          %212 = sbr.rel (%p210) target = $region40
        $region39: #{tpu_custom_call.1} parent=35 // pred_region
          %213 = dma.done [#allocation6], 512
        $region40: #{tpu_custom_call.1} parent=35 // pred_fallthru
          _
        // Predicated region
        $region41: #{tpu_custom_call.1} parent=35 // pred_check
          %p214 = pneg %p79
        $region42: #{tpu_custom_call.1} parent=35 // pred_check_branch
          %216 = sbr.rel (%p214) target = $region44
        $region43: #{tpu_custom_call.1} parent=35 // pred_region
          %217 = dma.done [#allocation9], 256
        $region44: #{tpu_custom_call.1} parent=35 // pred_fallthru
          _
        %p218 = pneg %p53
        %p219 = pneg %p50
        %p220 = pneg %p79
        %p221 = pneg %p76
        %p222 = pneg %p100
        %p223 = pneg %p97
        %p224 = pneg %p121
        %p225 = pneg %p118
        %p226 = pneg %p149
        %p227 = pneg %p146
        %s228 = sand.u32 %s136, 1
        %s229 = scalar_lea.sflag [#allocation7], %s228
        %s230 = sand.u32 %s136, 1
        %s231 = smul.addr %s230, 16
        %s232 = scalar_lea.vmem [#allocation10], %s231
        %s233 = smul.u32 2, %s29
        %s234 = smul.u32 2, %s29
        %s235 = smul.u32 %s29, 16
        loop: start=0, step=1, limit=16
        $region45: #{tpu_custom_call.1} parent=35 // loop_pre_header
          _
        $region46: #{tpu_custom_call.1} parent=35 // loop_header
          %s237 = sphi 0, %s241
          %p238 = scmp.ge.s32.totalorder %s237, 16
        $region47: #{tpu_custom_call.1} parent=35 // loop_header_branch
          %240 = sbr.rel (%p238) target = $region51
        $region48: #{tpu_custom_call.1} parent=35 // loop_body
          %s242 = sadd.s32 %s235, %s237
          %s243 = sshra.s32 %s242, 7
          %s244 = sand.u32 %s242, 127
          %s245 = sadd.s32 %s243, %s30
          %s246 = smul.u32 %s245, 128
          %s247 = sshra.s32 %s242, 7
          %s248 = sand.u32 %s242, 127
          %s249 = sadd.s32 %s246, %s248
          %s250 = sld [smem:[#allocation4 + %s249]]
          %s251 = scalar_lea.vmem [#allocation5], %s250
          %v252 = vld [vmem:[%s251] sm:$0x1]
          %s253 = scalar_lea.vmem [#allocation2], %s237
          %254 = vst [vmem:[%s253] sm:$0x1] %v252
        $region49: #{tpu_custom_call.1} parent=35 // loop_footer
          %s241 = sadd.s32 1, %s237
        $region50: #{tpu_custom_call.1} parent=35 // loop_footer_branch
          %236 = sbr.rel target = $region46
        $region51: #{tpu_custom_call.1} parent=35 // loop_exit
          _
        %v255 = vld [vmem:[#allocation2] sm:$0xff]
        %v256 = vld [vmem:[#allocation2 + $0x8] sm:$0xff]
        %v257 = vld [vmem:[#allocation8] sm:$0xff]
        %v258 = vld [vmem:[#allocation8 + $0x8] sm:$0xff]
        %v259 = vadd.f32 %v255, %v257
        %v260 = vadd.f32 %v256, %v258
        %v261 = vld [vmem:[%s3] sm:$0x1]
        %v262 = vld [vmem:[%s4] sm:$0x1]
        %263 = vadd.xlane.f32.xlu0 %v259
        %v264 = vpop.xlane.xlu0 %263
        %265 = vadd.xlane.f32.xlu0 %v260
        %v266 = vpop.xlane.xlu0 %265
        %v267 = vmul.f32 %v264, 0.0078125
        %v268 = vmul.f32 %v266, 0.0078125
        %v269 = vsub.f32 %v259, %v267
        %v270 = vsub.f32 %v260, %v268
        %v271 = vmul.f32 %v269, %v269
        %v272 = vmul.f32 %v270, %v270
        %273 = vadd.xlane.f32.xlu0 %v271
        %v274 = vpop.xlane.xlu0 %273
        %275 = vadd.xlane.f32.xlu0 %v272
        %v276 = vpop.xlane.xlu0 %275
        %v277 = vmul.f32 %v274, 0.0078125
        %v278 = vmul.f32 %v276, 0.0078125
        %v279 = vadd.f32 %v277, 1e-12
        %v280 = vadd.f32 %v278, 1e-12
        %v281 = vrsqrt.pop %v279
        %v282 = vrsqrt.pop %v280
        %v284 = vlaneseq
        %v285 = vshrl.u32 %v284, 7
        %v286 = vsub.s32 0, %v285
        %v287 = vrot.slane %v261, %v286
        %v289 = vmul.f32 %v287, %v281
        %v290 = vmul.f32 %v287, %v282
        %v291 = vmul.f32 %v269, %v289
        %v292 = vmul.f32 %v270, %v290
        %v294 = vlaneseq
        %v295 = vshrl.u32 %v294, 7
        %v296 = vsub.s32 0, %v295
        %v297 = vrot.slane %v262, %v296
        %v299 = vadd.f32 %v291, %v297
        %v300 = vadd.f32 %v292, %v297
        %301 = vst [vmem:[%s232] sm:$0xff] %v299
        %302 = vst [vmem:[%s232 + $0x8] sm:$0xff] %v300
        %s303 = sand.u32 %s136, 1
        %s304 = scalar_lea.sflag [#allocation7], %s303
        %s305 = sand.u32 %s136, 1
        %s306 = smul.addr %s305, 16
        %s307 = scalar_lea.vmem [#allocation10], %s306
        // Predicated region
        $region52: #{tpu_custom_call.1} parent=35 // pred_check
          %p308 = pneg %p146
        $region53: #{tpu_custom_call.1} parent=35 // pred_check_branch
          %310 = sbr.rel (%p308) target = $region55
        $region54: #{tpu_custom_call.1} parent=35 // pred_region
          %s311 = smul.u32 2, %s29
          %s313 = ssub.s32 256, 256
          %314 = vsyncadd %s304, %s313
          %s315 = smul.addr %s30, 2
          %s316 = sadd.s32 %s311, %s315
          %s317 = smul.addr %s316, 128
          %s318 = scalar_lea.hbm %s5, %s317
          %s319 = sshll.u32 %s307, 4
          %s320 = int_to_ptr.vmem [resolvable:$true] %s319
          %325 = dma.vmem_to_hbm [thread:$0]  %s320, 256, %s318, %s304, 128, 128, 8
        $region55: #{tpu_custom_call.1} parent=35 // pred_fallthru
          _
      $region36: #{tpu_custom_call.1} parent=5 // pred_fallthru
        _
      %p326 = scmp.le.s32.totalorder 2, %s20
      // Predicated region
      $region56: #{tpu_custom_call.1} parent=5 // pred_check
        %p327 = pneg %p326
      $region57: #{tpu_custom_call.1} parent=5 // pred_check_branch
        %329 = sbr.rel (%p327) target = $region59
      $region58: #{tpu_custom_call.1} parent=5 // pred_region
        %s330 = ssub.s32 %s20, 2
        // Predicated region
        $region60: #{tpu_custom_call.1} parent=58 // pred_check
          %p331 = pneg %p152
        $region61: #{tpu_custom_call.1} parent=58 // pred_check_branch
          %333 = sbr.rel (%p331) target = $region63
        $region62: #{tpu_custom_call.1} parent=58 // pred_region
          %s334 = sand.u32 %s137, 1
          %s335 = scalar_lea.sflag [#allocation7], %s334
          %s336 = sand.u32 %s137, 1
          %s337 = smul.addr %s336, 16
          %s338 = scalar_lea.vmem [#allocation10], %s337
          %339 = dma.done %s335, 256
        $region63: #{tpu_custom_call.1} parent=58 // pred_fallthru
          _
      $region59: #{tpu_custom_call.1} parent=5 // pred_fallthru
        _
    $region6: #{tpu_custom_call.1} parent=1 // loop_footer
      %s24 = sadd.s32 1, %s20
    $region7: #{tpu_custom_call.1} parent=1 // loop_footer_branch
      %19 = sbr.rel target = $region3
    $region8: #{tpu_custom_call.1} parent=1 // loop_exit
      _
    %340 = vsyncpa [#allocation6], 1
    %s341 = scalar_lea.sflag [#allocation6], 1
    %342 = vsyncpa %s341, 1
    %343 = vsyncpa [#allocation9], 1
    %344 = vsyncpa [#allocation7], 1
    %s345 = scalar_lea.sflag [#allocation7], 1
    %346 = vsyncpa %s345, 1

</llo_original>
